<compile_context>
chip_gen: v5e
topology: v5e:2x2
jax: 0.10.0
libtpu: 0.0.40
codegen_flags: <defaults>
</compile_context>

<pallas_src>
import jax
import jax.numpy as jnp
import numpy as np
from jax.experimental import pallas as pl
from jax.experimental.pallas import tpu as pltpu

_NEG_INF = float("-inf")
_F32_MIN = float(np.finfo(np.float32).min)


# -----------------------------------------------------------------------------
# Tiling plan (generation aware)
# -----------------------------------------------------------------------------
def _vmem_capacity_bytes():
    try:
        info = pltpu.get_tpu_info()
        cap = getattr(info, "vmem_capacity_bytes", None)
        if cap:
            return int(cap)
    except Exception:
        pass
    return 64 * 1024 * 1024            # conservative fallback: v7x physical VMEM


def _plan_tiling(seq_len, hidden, itemsize):
    """Return (padded_seq, seq_tile, vmem_limit_bytes).

    seq_tile is a multiple of 128 rows whose double-buffered (TS, H) hidden
    block fits a generation-dependent budget (~VMEM/6, clamped to 8..24 MiB);
    the sequence is padded up to a multiple of the tile (masked tail)."""
    cap = _vmem_capacity_bytes()
    vmem_limit = max(32 << 20, min((cap * 3) // 4, 100 << 20))
    if seq_len <= 512:
        return seq_len, seq_len, vmem_limit
    budget = min(24 << 20, max(8 << 20, cap // 6))
    max_rows = budget // max(1, 2 * hidden * itemsize)
    ts = max(128, min((max_rows // 128) * 128, 2048))
    s128 = ((seq_len + 127) // 128) * 128
    ts = min(ts, s128)
    s_pad = ((seq_len + ts - 1) // ts) * ts
    return s_pad, ts, vmem_limit


# -----------------------------------------------------------------------------
# Fused online-softmax + weighted-sum update (shared by all scoring schemes)
# -----------------------------------------------------------------------------
def _online_attend(sc_row, h, out_ref, alpha_ref, score_sc, m_sc, l_sc, acc_sc):
    """sc_row: (1, TS) f32 masked scores for this tile; h: (TS, H) hidden tile."""
    kt = pl.program_id(1)
    nkt = pl.num_programs(1)
    ts = sc_row.shape[-1]

    @pl.when(kt == 0)
    def _():
        m_sc[...] = jnp.full_like(m_sc, _NEG_INF)
        l_sc[...] = jnp.zeros_like(l_sc)
        acc_sc[...] = jnp.zeros_like(acc_sc)

    # Stash the raw masked scores so alpha can be emitted once, at the end,
    # from this resident (1, S_pad) scratch (no per-tile re-softmax, no score
    # round trip through HBM).
    if score_sc.shape[-1] == ts:
        score_sc[...] = sc_row
    else:
        start = pl.multiple_of(kt * ts, 128)       # ts is a multiple of 128 here
        score_sc[:, pl.ds(start, ts)] = sc_row

    m_prev = m_sc[...]                                                  # (1, 1)
    m_new = jnp.maximum(m_prev, jnp.max(sc_row, axis=-1, keepdims=True))
    m_safe = jnp.maximum(m_new, _F32_MIN)          # avoid (-inf) - (-inf) = NaN
    scale = jnp.exp(m_prev - m_safe)                                    # (1, 1)
    p = jnp.exp(sc_row - m_safe)                                        # (1, TS)
    l_sc[...] = scale * l_sc[...] + jnp.sum(p, axis=-1, keepdims=True)
    acc_sc[...] = scale * acc_sc[...] + jnp.dot(
        p.astype(h.dtype), h, preferred_element_type=jnp.float32)
    m_sc[...] = m_new

    @pl.when(kt == nkt - 1)
    def _():
        inv_l = 1.0 / l_sc[...]                    # one divide per batch row
        alpha_ref[0] = (jnp.exp(score_sc[...] - m_sc[...]) * inv_l
                        ).astype(alpha_ref.dtype)
        out_ref[0] = (acc_sc[...] * inv_l).astype(out_ref.dtype)


# -----------------------------------------------------------------------------
# Scoring + fused attention kernels
# -----------------------------------------------------------------------------
def _dot_like_kernel(h_ref, row_ref, mask_ref, out_ref, alpha_ref,
                     score_sc, m_sc, l_sc, acc_sc):
    # row_ref holds mean_sent ('dot') or u = mean_sent @ W^T ('general', hoisted
    # in the wrapper) as a lane-dense f32 (1, H) row.
    h = h_ref[0]                                        # (TS, H), native dtype
    row = row_ref[0]                                    # (1, H) f32
    sc = jnp.sum(h * row, axis=-1)[None, :]             # VPU mul + lane reduce
    mask = mask_ref[0]                                   # (1, TS)
    sc = jnp.where(mask > 0.5, sc, _NEG_INF)
    _online_attend(sc, h, out_ref, alpha_ref, score_sc, m_sc, l_sc, acc_sc)


def _concat_kernel(h_ref, sy_ref, wh_ref, ctx_ref, mask_ref, out_ref, alpha_ref,
                   score_sc, m_sc, l_sc, acc_sc):
    h = h_ref[0]                                                     # (TS, H)
    wy = jnp.dot(h, wh_ref[...], preferred_element_type=jnp.float32)  # MXU, f32 acc
    m_t = jnp.tanh(wy + sy_ref[0])                                   # (TS, H) f32, EUP
    sc = jnp.sum(m_t * ctx_ref[...], axis=-1)[None, :]               # (1, TS)
    mask = mask_ref[0]
    sc = jnp.where(mask > 0.5, sc, _NEG_INF)
    _online_attend(sc, h, out_ref, alpha_ref, score_sc, m_sc, l_sc, acc_sc)


# -----------------------------------------------------------------------------
# Fused AttentionLayer forward
# -----------------------------------------------------------------------------
def attention_forward(sent_batch, mean_sent_batch, batch_mask, *, att_type,
                      W=None, context=None, seq_tile=None):
    """Returns (out, alpha) exactly like torch AttentionLayer.forward."""
    B, S, H = sent_batch.shape
    assert mean_sent_batch.shape == (B, H)
    assert batch_mask.shape == (B, S)
    itemsize = jnp.dtype(sent_batch.dtype).itemsize

    s_pad, ts, vmem_limit = _plan_tiling(S, H, itemsize)
    if seq_tile is not None:                      # test / tuning hook
        ts = int(seq_tile)
        s_pad = ((S + ts - 1) // ts) * ts

    mask = batch_mask.astype(jnp.float32)
    hidden = sent_batch
    if s_pad != S:
        hidden = jnp.pad(hidden, ((0, 0), (0, s_pad - S), (0, 0)))
        mask = jnp.pad(mask, ((0, 0), (0, s_pad - S)))
    mask3 = mask.reshape(B, 1, s_pad)
    nkt = s_pad // ts
    grid = (B, nkt)

    h_spec = pl.BlockSpec((1, ts, H), lambda b, k: (b, k, 0))
    row_spec = pl.BlockSpec((1, 1, H), lambda b, k: (b, 0, 0))
    mask_spec = pl.BlockSpec((1, 1, ts), lambda b, k: (b, 0, k))
    out_specs = (pl.BlockSpec((1, 1, H), lambda b, k: (b, 0, 0)),
                 pl.BlockSpec((1, 1, s_pad), lambda b, k: (b, 0, 0)))
    out_shape = (jax.ShapeDtypeStruct((B, 1, H), sent_batch.dtype),
                 jax.ShapeDtypeStruct((B, 1, s_pad), jnp.float32))
    scratch = [pltpu.VMEM((1, s_pad), jnp.float32),    # masked score row
               pltpu.VMEM((1, 1), jnp.float32),        # running max
               pltpu.VMEM((1, 1), jnp.float32),        # running denom
               pltpu.VMEM((1, H), jnp.float32)]        # running weighted sum
    cparams = pltpu.CompilerParams(
        dimension_semantics=("parallel", "arbitrary"),
        vmem_limit_bytes=vmem_limit)

    if att_type == "dot":
        row = mean_sent_batch.astype(jnp.float32).reshape(B, 1, H)
        cost = pl.CostEstimate(
            flops=int(7 * B * s_pad * H),
            transcendentals=int(2 * B * s_pad),
            bytes_accessed=int(itemsize * B * s_pad * H
                               + 4 * (2 * B * s_pad + 2 * B * H)))
        out3, alpha3 = pl.pallas_call(
            _dot_like_kernel, out_shape=out_shape, grid=grid,
            in_specs=[h_spec, row_spec, mask_spec],
            out_specs=out_specs, scratch_shapes=scratch,
            compiler_params=cparams, cost_estimate=cost,
        )(hidden, row, mask3)

    elif att_type == "general":
        # Hoisted once per call: u = mean_sent @ W^T  (score = h @ (W @ s^T) = h . u)
        u = jnp.einsum("bk,jk->bj", mean_sent_batch.astype(jnp.float32),
                       W.astype(jnp.float32)).reshape(B, 1, H)
        cost = pl.CostEstimate(
            flops=int(7 * B * s_pad * H),
            transcendentals=int(2 * B * s_pad),
            bytes_accessed=int(itemsize * B * s_pad * H
                               + 4 * (2 * B * s_pad + 2 * B * H)))
        out3, alpha3 = pl.pallas_call(
            _dot_like_kernel, out_shape=out_shape, grid=grid,
            in_specs=[h_spec, row_spec, mask_spec],
            out_specs=out_specs, scratch_shapes=scratch,
            compiler_params=cparams, cost_estimate=cost,
        )(hidden, u, mask3)

    elif att_type == "concat":
        Wh = W[:H].astype(sent_batch.dtype)        # native-dtype MXU path (bf16-ready)
        # Hoisted once per call: sy = mean_sent @ W_s
        sy = jnp.einsum("bh,hk->bk", mean_sent_batch.astype(jnp.float32),
                        W[H:].astype(jnp.float32)).reshape(B, 1, H)
        ctx_row = context.astype(jnp.float32).reshape(1, H)
        wh_spec = pl.BlockSpec((H, H), lambda b, k: (0, 0))   # stays resident
        ctx_spec = pl.BlockSpec((1, H), lambda b, k: (0, 0))  # stays resident
        cost = pl.CostEstimate(
            flops=int(2 * B * s_pad * H * H + 9 * B * s_pad * H),
            transcendentals=int(B * s_pad * H + 2 * B * s_pad),
            bytes_accessed=int(itemsize * (B * s_pad * H + H * H)
                               + 4 * (2 * B * s_pad + 3 * B * H + H)))
        out3, alpha3 = pl.pallas_call(
            _concat_kernel, out_shape=out_shape, grid=grid,
            in_specs=[h_spec, row_spec, wh_spec, ctx_spec, mask_spec],
            out_specs=out_specs, scratch_shapes=scratch,
            compiler_params=cparams, cost_estimate=cost,
        )(hidden, sy, Wh, ctx_row, mask3)

    else:
        raise NotImplementedError(att_type)

    out = out3.reshape(B, H)
    alpha = alpha3.reshape(B, s_pad)[:, :S]
    return out, alpha


# -----------------------------------------------------------------------------
# Parameter containers mirroring the PyTorch modules
# -----------------------------------------------------------------------------
def _xavier_normal(key, shape, gain):
    fan_in, fan_out = shape
    std = gain * np.sqrt(2.0 / (fan_in + fan_out))
    return std * jax.random.normal(key, shape, dtype=jnp.float32)


class ScoringLayer:
    def __init__(self, input_size, att_type="concat", key=None):
        self.att_type = att_type
        self.input_size = input_size
        if key is None:
            key = jax.random.PRNGKey(0)
        k_w, k_c = jax.random.split(key)
        tanh_gain = 5.0 / 3.0                 # torch.nn.init.calculate_gain('tanh')
        if att_type == "concat":
            self.W = _xavier_normal(k_w, (2 * input_size, input_size), tanh_gain)
            # TODO(synk): torch leaves `context` uninitialized; init deterministically here.
            self.context = jax.random.normal(k_c, (input_size,), dtype=jnp.float32)
        elif att_type == "general":
            self.W = _xavier_normal(k_w, (input_size, input_size), tanh_gain)
            self.context = None
        else:
            self.W = None
            self.context = None


class AttentionLayer:
    def __init__(self, input_size, scoring_scheme="dot", key=None):
        self.input_size = input_size
        self.scoring_layer = ScoringLayer(input_size, att_type=scoring_scheme, key=key)

    def __call__(self, sent_batch, mean_sent_batch, batch_mask, seq_tile=None):
        assert sent_batch.shape[2] == self.input_size
        return attention_forward(
            sent_batch, mean_sent_batch, batch_mask,
            att_type=self.scoring_layer.att_type,
            W=self.scoring_layer.W,
            context=self.scoring_layer.context,
            seq_tile=seq_tile)


# -----------------------------------------------------------------------------
# Pure-JAX reference (correctness check only)
# -----------------------------------------------------------------------------
def _attention_ref(h, s, mask, att_type, W=None, ctx=None):
    B, S, H = h.shape
    s_exp = jnp.broadcast_to(s[:, None, :], (B, S, H))
    if att_type == "concat":
        cat = jnp.concatenate([h, s_exp], axis=2)
        M = jnp.tanh(jnp.einsum("bsk,kh->bsh", cat, W))
        score = jnp.einsum("bsh,h->bs", M, ctx)
    elif att_type == "dot":
        score = jnp.sum(h * s_exp, axis=2)
    elif att_type == "general":
        hw = jnp.einsum("bsh,hk->bsk", h, W)
        score = jnp.einsum("bsk,bk->bs", hw, s)
    else:
        raise NotImplementedError(att_type)
    score = jnp.where(mask > 0.5, score, -jnp.inf)
    alpha = jax.nn.softmax(score, axis=1)
    out = jnp.einsum("bs,bsh->bh", alpha, h)
    return out, alpha


def _check_case(B, S, H, lengths, seq_tile, key):
    k_h, k_s, k_p = jax.random.split(key, 3)
    sent_batch = jax.random.normal(k_h, (B, S, H), dtype=jnp.float32)
    mean_sent_batch = jax.random.normal(k_s, (B, H), dtype=jnp.float32)
    batch_mask = (jnp.arange(S)[None, :] < jnp.asarray(lengths)[:, None]
                  ).astype(jnp.float32)
    for scheme in ("dot", "concat", "general"):
        layer = AttentionLayer(H, scoring_scheme=scheme, key=k_p)
        out, alpha = layer(sent_batch, mean_sent_batch, batch_mask, seq_tile=seq_tile)
        out = jax.block_until_ready(out)
        alpha = jax.block_until_ready(alpha)
        ref_out, ref_alpha = _attention_ref(
            sent_batch, mean_sent_batch, batch_mask, scheme,
            W=layer.scoring_layer.W, ctx=layer.scoring_layer.context)
        assert out.shape == (B, H) and alpha.shape == (B, S)
        np.testing.assert_allclose(np.asarray(alpha), np.asarray(ref_alpha),
                                   rtol=1e-4, atol=2e-5)
        np.testing.assert_allclose(np.asarray(out), np.asarray(ref_out),
                                   rtol=1e-4, atol=2e-5)


if __name__ == "__main__":
    key = jax.random.PRNGKey(0)
    k_small, k_tiled = jax.random.split(key)
    # Small shapes consistent with the module (single-tile path).
    _check_case(B=2, S=8, H=32, lengths=[8, 5], seq_tile=None, key=k_small)
    # Multi-tile + padded-sequence path (exercises the online softmax across
    # tiles, the dynamic lane-offset score stash, and a fully-masked tile).
    _check_case(B=2, S=300, H=128, lengths=[300, 130], seq_tile=128, key=k_tiled)
    print("KERNEL_OK")
</pallas_src>

<mosaic_0001>
module attributes {stable_mosaic.version = 11 : i64} {
  func.func @_dot_like_kernel(%arg0: i32, %arg1: i32, %arg2: memref<1x8x32xf32, #tpu.memory_space<vmem>>, %arg3: memref<1x1x32xf32, #tpu.memory_space<vmem>>, %arg4: memref<1x1x8xf32, #tpu.memory_space<vmem>>, %arg5: memref<1x1x32xf32, #tpu.memory_space<vmem>>, %arg6: memref<1x1x8xf32, #tpu.memory_space<vmem>>, %arg7: memref<1x8xf32, #tpu.memory_space<vmem>>, %arg8: memref<1x1xf32, #tpu.memory_space<vmem>>, %arg9: memref<1x1xf32, #tpu.memory_space<vmem>>, %arg10: memref<1x32xf32, #tpu.memory_space<vmem>>) attributes {dimension_semantics = [#tpu.dimension_semantics<parallel>, #tpu.dimension_semantics<arbitrary>], iteration_bounds = array<i64: 2, 1>, scalar_prefetch = 0 : i64, scratch_operands = 4 : i64, tpu.core_type = #tpu.core_type<tc>, window_params = [{transform_indices = @transform_0, window_bounds = array<i64: 1, 8, 32>}, {transform_indices = @transform_1, window_bounds = array<i64: 1, 1, 32>}, {transform_indices = @transform_2, window_bounds = array<i64: 1, 1, 8>}, {transform_indices = @transform_3, window_bounds = array<i64: 1, 1, 32>}, {transform_indices = @transform_4, window_bounds = array<i64: 1, 1, 8>}]} {
    %c0 = arith.constant 0 : index
    %c0_0 = arith.constant 0 : index
    %c0_1 = arith.constant 0 : index
    %0 = vector.load %arg2[%c0, %c0_0, %c0_1] : memref<1x8x32xf32, #tpu.memory_space<vmem>>, vector<1x8x32xf32>
    %1 = vector.shape_cast %0 : vector<1x8x32xf32> to vector<8x32xf32>
    %c0_2 = arith.constant 0 : index
    %c0_3 = arith.constant 0 : index
    %c0_4 = arith.constant 0 : index
    %2 = vector.load %arg3[%c0_2, %c0_3, %c0_4] : memref<1x1x32xf32, #tpu.memory_space<vmem>>, vector<1x1x32xf32>
    %3 = vector.shape_cast %2 : vector<1x1x32xf32> to vector<1x32xf32>
    %4 = vector.broadcast %3 : vector<1x32xf32> to vector<8x32xf32>
    %5 = arith.mulf %1, %4 : vector<8x32xf32>
    %cst = arith.constant dense<0.000000e+00> : vector<8xf32>
    %6 = vector.multi_reduction <add>, %5, %cst [1] : vector<8x32xf32> to vector<8xf32>
    %7 = vector.shape_cast %6 : vector<8xf32> to vector<1x8xf32>
    %c0_5 = arith.constant 0 : index
    %c0_6 = arith.constant 0 : index
    %c0_7 = arith.constant 0 : index
    %8 = vector.load %arg4[%c0_5, %c0_6, %c0_7] : memref<1x1x8xf32, #tpu.memory_space<vmem>>, vector<1x1x8xf32>
    %9 = vector.shape_cast %8 : vector<1x1x8xf32> to vector<1x8xf32>
    %cst_8 = arith.constant 5.000000e-01 : f32
    %10 = vector.broadcast %cst_8 : f32 to vector<1x8xf32>
    %11 = arith.cmpf ogt, %9, %10 : vector<1x8xf32>
    %cst_9 = arith.constant 0xFF800000 : f32
    %12 = vector.broadcast %cst_9 : f32 to vector<1x8xf32>
    %13 = arith.select %11, %7, %12 : vector<1x8xi1>, vector<1x8xf32>
    %c0_i32 = arith.constant 0 : i32
    %14 = arith.cmpi eq, %arg1, %c0_i32 : i32
    %15 = arith.extui %14 : i1 to i32
    %c0_i32_10 = arith.constant 0 : i32
    %16 = arith.cmpi ne, %15, %c0_i32_10 : i32
    scf.if %16 {
      %cst_31 = arith.constant 0xFF800000 : f32
      %45 = vector.broadcast %cst_31 : f32 to vector<1x1xf32>
      %c0_32 = arith.constant 0 : index
      %c0_33 = arith.constant 0 : index
      %46 = vector.load %arg8[%c0_32, %c0_33] : memref<1x1xf32, #tpu.memory_space<vmem>>, vector<1x1xf32>
      tpu.vector_store %arg8[%c0_32, %c0_33], %45 {strides = array<i32>} : memref<1x1xf32, #tpu.memory_space<vmem>>, vector<1x1xf32>,
      %cst_34 = arith.constant 0.000000e+00 : f32
      %47 = vector.broadcast %cst_34 : f32 to vector<1x1xf32>
      %c0_35 = arith.constant 0 : index
      %c0_36 = arith.constant 0 : index
      %48 = vector.load %arg9[%c0_35, %c0_36] : memref<1x1xf32, #tpu.memory_space<vmem>>, vector<1x1xf32>
      tpu.vector_store %arg9[%c0_35, %c0_36], %47 {strides = array<i32>} : memref<1x1xf32, #tpu.memory_space<vmem>>, vector<1x1xf32>,
      %cst_37 = arith.constant 0.000000e+00 : f32
      %49 = vector.broadcast %cst_37 : f32 to vector<1x32xf32>
      %c0_38 = arith.constant 0 : index
      %c0_39 = arith.constant 0 : index
      %50 = vector.load %arg10[%c0_38, %c0_39] : memref<1x32xf32, #tpu.memory_space<vmem>>, vector<1x32xf32>
      tpu.vector_store %arg10[%c0_38, %c0_39], %49 {strides = array<i32>} : memref<1x32xf32, #tpu.memory_space<vmem>>, vector<1x32xf32>,
    } else {
    }
    %c0_11 = arith.constant 0 : index
    %c0_12 = arith.constant 0 : index
    %17 = vector.load %arg7[%c0_11, %c0_12] : memref<1x8xf32, #tpu.memory_space<vmem>>, vector<1x8xf32>
    tpu.vector_store %arg7[%c0_11, %c0_12], %13 {strides = array<i32>} : memref<1x8xf32, #tpu.memory_space<vmem>>, vector<1x8xf32>,
    %c0_13 = arith.constant 0 : index
    %c0_14 = arith.constant 0 : index
    %18 = vector.load %arg8[%c0_13, %c0_14] : memref<1x1xf32, #tpu.memory_space<vmem>>, vector<1x1xf32>
    %cst_15 = arith.constant dense<0xFF800000> : vector<1xf32>
    %19 = vector.multi_reduction <maximumf>, %13, %cst_15 [1] : vector<1x8xf32> to vector<1xf32>
    %20 = vector.shape_cast %19 : vector<1xf32> to vector<1x1xf32>
    %21 = arith.maximumf %18, %20 : vector<1x1xf32>
    %cst_16 = arith.constant -3.40282347E+38 : f32
    %22 = vector.broadcast %cst_16 : f32 to vector<1x1xf32>
    %23 = arith.maximumf %21, %22 : vector<1x1xf32>
    %24 = arith.subf %18, %23 : vector<1x1xf32>
    %25 = math.exp %24 : vector<1x1xf32>
    %26 = vector.broadcast %23 : vector<1x1xf32> to vector<1x8xf32>
    %27 = arith.subf %13, %26 : vector<1x8xf32>
    %28 = math.exp %27 : vector<1x8xf32>
    %c0_17 = arith.constant 0 : index
    %c0_18 = arith.constant 0 : index
    %29 = vector.load %arg9[%c0_17, %c0_18] : memref<1x1xf32, #tpu.memory_space<vmem>>, vector<1x1xf32>
    %30 = arith.mulf %25, %29 : vector<1x1xf32>
    %cst_19 = arith.constant dense<0.000000e+00> : vector<1xf32>
    %31 = vector.multi_reduction <add>, %28, %cst_19 [1] : vector<1x8xf32> to vector<1xf32>
    %32 = vector.shape_cast %31 : vector<1xf32> to vector<1x1xf32>
    %33 = arith.addf %30, %32 : vector<1x1xf32>
    %c0_20 = arith.constant 0 : index
    %c0_21 = arith.constant 0 : index
    %34 = vector.load %arg9[%c0_20, %c0_21] : memref<1x1xf32, #tpu.memory_space<vmem>>, vector<1x1xf32>
    tpu.vector_store %arg9[%c0_20, %c0_21], %33 {strides = array<i32>} : memref<1x1xf32, #tpu.memory_space<vmem>>, vector<1x1xf32>,
    %c0_22 = arith.constant 0 : index
    %c0_23 = arith.constant 0 : index
    %35 = vector.load %arg10[%c0_22, %c0_23] : memref<1x32xf32, #tpu.memory_space<vmem>>, vector<1x32xf32>
    %36 = vector.broadcast %25 : vector<1x1xf32> to vector<1x32xf32>
    %37 = arith.mulf %36, %35 : vector<1x32xf32>
    %cst_24 = arith.constant dense<0.000000e+00> : vector<1x32xf32>
    %38 = tpu.matmul %28, %1, %cst_24 {dimension_numbers = #tpu.dot_dimension_numbers<[1], [0], [0], [1], [0, 0, 1, 1], [], []>} : vector<1x8xf32>, vector<8x32xf32>, vector<1x32xf32> -> vector<1x32xf32>
    %39 = arith.addf %37, %38 : vector<1x32xf32>
    %c0_25 = arith.constant 0 : index
    %c0_26 = arith.constant 0 : index
    %40 = vector.load %arg10[%c0_25, %c0_26] : memref<1x32xf32, #tpu.memory_space<vmem>>, vector<1x32xf32>
    tpu.vector_store %arg10[%c0_25, %c0_26], %39 {strides = array<i32>} : memref<1x32xf32, #tpu.memory_space<vmem>>, vector<1x32xf32>,
    %c0_27 = arith.constant 0 : index
    %c0_28 = arith.constant 0 : index
    %41 = vector.load %arg8[%c0_27, %c0_28] : memref<1x1xf32, #tpu.memory_space<vmem>>, vector<1x1xf32>
    tpu.vector_store %arg8[%c0_27, %c0_28], %21 {strides = array<i32>} : memref<1x1xf32, #tpu.memory_space<vmem>>, vector<1x1xf32>,
    %c0_i32_29 = arith.constant 0 : i32
    %42 = arith.cmpi eq, %arg1, %c0_i32_29 : i32
    %43 = arith.extui %42 : i1 to i32
    %c0_i32_30 = arith.constant 0 : i32
    %44 = arith.cmpi ne, %43, %c0_i32_30 : i32
    scf.if %44 {
      %c0_31 = arith.constant 0 : index
      %c0_32 = arith.constant 0 : index
      %45 = vector.load %arg9[%c0_31, %c0_32] : memref<1x1xf32, #tpu.memory_space<vmem>>, vector<1x1xf32>
      %cst_33 = arith.constant 1.000000e+00 : f32
      %46 = vector.broadcast %cst_33 : f32 to vector<1x1xf32>
      %47 = arith.divf %46, %45 : vector<1x1xf32>
      %c0_34 = arith.constant 0 : index
      %c0_35 = arith.constant 0 : index
      %48 = vector.load %arg7[%c0_34, %c0_35] : memref<1x8xf32, #tpu.memory_space<vmem>>, vector<1x8xf32>
      %c0_36 = arith.constant 0 : index
      %c0_37 = arith.constant 0 : index
      %49 = vector.load %arg8[%c0_36, %c0_37] : memref<1x1xf32, #tpu.memory_space<vmem>>, vector<1x1xf32>
      %50 = vector.broadcast %49 : vector<1x1xf32> to vector<1x8xf32>
      %51 = arith.subf %48, %50 : vector<1x8xf32>
      %52 = math.exp %51 : vector<1x8xf32>
      %53 = vector.broadcast %47 : vector<1x1xf32> to vector<1x8xf32>
      %54 = arith.mulf %52, %53 : vector<1x8xf32>
      %c0_38 = arith.constant 0 : index
      %c0_39 = arith.constant 0 : index
      %c0_40 = arith.constant 0 : index
      %55 = vector.load %arg6[%c0_38, %c0_39, %c0_40] : memref<1x1x8xf32, #tpu.memory_space<vmem>>, vector<1x1x8xf32>
      %56 = vector.shape_cast %55 : vector<1x1x8xf32> to vector<1x8xf32>
      %57 = vector.shape_cast %54 : vector<1x8xf32> to vector<1x1x8xf32>
      tpu.vector_store %arg6[%c0_38, %c0_39, %c0_40], %57 {strides = array<i32>} : memref<1x1x8xf32, #tpu.memory_space<vmem>>, vector<1x1x8xf32>,
      %c0_41 = arith.constant 0 : index
      %c0_42 = arith.constant 0 : index
      %58 = vector.load %arg10[%c0_41, %c0_42] : memref<1x32xf32, #tpu.memory_space<vmem>>, vector<1x32xf32>
      %59 = vector.broadcast %47 : vector<1x1xf32> to vector<1x32xf32>
      %60 = arith.mulf %58, %59 : vector<1x32xf32>
      %c0_43 = arith.constant 0 : index
      %c0_44 = arith.constant 0 : index
      %c0_45 = arith.constant 0 : index
      %61 = vector.load %arg5[%c0_43, %c0_44, %c0_45] : memref<1x1x32xf32, #tpu.memory_space<vmem>>, vector<1x1x32xf32>
      %62 = vector.shape_cast %61 : vector<1x1x32xf32> to vector<1x32xf32>
      %63 = vector.shape_cast %60 : vector<1x32xf32> to vector<1x1x32xf32>
      tpu.vector_store %arg5[%c0_43, %c0_44, %c0_45], %63 {strides = array<i32>} : memref<1x1x32xf32, #tpu.memory_space<vmem>>, vector<1x1x32xf32>,
    } else {
    }
    return
  }
  func.func @transform_0(%arg0: i32, %arg1: i32) -> (i32, i32, i32) {
    %c0_i32 = arith.constant 0 : i32
    %c0_i32_0 = arith.constant 0 : i32
    return %arg0, %arg1, %c0_i32 : i32, i32, i32
  }
  func.func @transform_1(%arg0: i32, %arg1: i32) -> (i32, i32, i32) {
    %c0_i32 = arith.constant 0 : i32
    %c0_i32_0 = arith.constant 0 : i32
    %c0_i32_1 = arith.constant 0 : i32
    return %arg0, %c0_i32, %c0_i32_0 : i32, i32, i32
  }
  func.func @transform_2(%arg0: i32, %arg1: i32) -> (i32, i32, i32) {
    %c0_i32 = arith.constant 0 : i32
    %c0_i32_0 = arith.constant 0 : i32
    return %arg0, %c0_i32, %arg1 : i32, i32, i32
  }
  func.func @transform_3(%arg0: i32, %arg1: i32) -> (i32, i32, i32) {
    %c0_i32 = arith.constant 0 : i32
    %c0_i32_0 = arith.constant 0 : i32
    %c0_i32_1 = arith.constant 0 : i32
    return %arg0, %c0_i32, %c0_i32_0 : i32, i32, i32
  }
  func.func @transform_4(%arg0: i32, %arg1: i32) -> (i32, i32, i32) {
    %c0_i32 = arith.constant 0 : i32
    %c0_i32_0 = arith.constant 0 : i32
    %c0_i32_1 = arith.constant 0 : i32
    return %arg0, %c0_i32, %c0_i32_0 : i32, i32, i32
  }
}

</mosaic_0001>

<llo_original>
// kernel: tpu_custom_call.1
$region0: #{tpu_custom_call.1}
  #allocation0 [shape = 'u32[]', space=smem, size = 0x4, offset = 0x4, fixed_abs, tag = 'smem constant byte address 0x4 - core index']
  #allocation1 [shape = 'u32[72,128]{1,0:T(1,128)}', space=vmem, size = 0x9000, scoped, tag = 'internal scratch']
  #allocation2 [shape = 'f32[1,8]{1,0:T(1,128)}', space=vmem, size = 0x200, scoped, tag = 'scratch operand']
  #allocation3 [shape = 'f32[1,1]{1,0:T(1,128)}', space=vmem, size = 0x200, scoped, tag = 'scratch operand']
  #allocation4 [shape = 'f32[1,1]{1,0:T(1,128)}', space=vmem, size = 0x200, scoped, tag = 'scratch operand']
  #allocation5 [shape = 'f32[1,32]{1,0:T(1,128)}', space=vmem, size = 0x200, scoped, tag = 'scratch operand']
  %s0 = inlined_call_operand.hbm [shape: f32[2,8,32], index: 0, kind: input, shape index: {}]
  %s1 = inlined_call_operand.hbm [shape: f32[2,1,32], index: 1, kind: input, shape index: {}]
  %s2 = inlined_call_operand.hbm [shape: f32[2,1,8], index: 2, kind: input, shape index: {}]
  %s3 = inlined_call_operand.hbm [shape: f32[2,1,32], index: 3, kind: output, shape index: {0}]
  %s4 = inlined_call_operand.hbm [shape: f32[2,1,8], index: 4, kind: output, shape index: {1}]
  %5 = xla_tuple %s3, %s4
  %s6 = sld [smem:[#allocation0]]
  $region73: #{tpu_custom_call.1} parent=0
    _
  %s8 = ssub.s32 1, %s6
  %s9 = scalar_select 0, %s8, %s6
  $region1: #{tpu_custom_call.1} parent=0
    #allocation6 [shape = 'u8[8192]{0}', space=vmem, size = 0x2000, scoped, tag = 'input window, operand 0']
    #allocation7 [shape = 's32[2]{0}', space=sflag, size = 0x8, scoped, tag = 'scoped memory for tpu_custom_call.1']
    #allocation8 [shape = 's32[2]{0}', space=sflag, size = 0x8, scoped, tag = 'scoped memory for tpu_custom_call.1']
    #allocation9 [shape = 'u8[1024]{0}', space=vmem, size = 0x400, scoped, tag = 'input window, operand 1']
    #allocation10 [shape = 's32[2]{0}', space=sflag, size = 0x8, scoped, tag = 'scoped memory for tpu_custom_call.1']
    #allocation11 [shape = 'u8[1024]{0}', space=vmem, size = 0x400, scoped, tag = 'input window, operand 2']
    #allocation12 [shape = 'u8[1024]{0}', space=vmem, size = 0x400, scoped, tag = 'output window, operand 0']
    #allocation13 [shape = 'u8[1024]{0}', space=vmem, size = 0x400, scoped, tag = 'output window, operand 1']
    #allocation14 [shape = 's32[2]{0}', space=sflag, size = 0x8, scoped, tag = 'scoped memory for tpu_custom_call.1']
    %10 = vsyncpa [#allocation7], 0
    %s11 = scalar_lea.sflag [#allocation7], 1
    %12 = vsyncpa %s11, 0
    %13 = vsyncpa [#allocation10], 0
    %s14 = scalar_lea.sflag [#allocation10], 1
    %15 = vsyncpa %s14, 0
    %16 = vsyncpa [#allocation8], 0
    %s17 = scalar_lea.sflag [#allocation8], 1
    %18 = vsyncpa %s17, 0
    %19 = vsyncpa [#allocation14], 0
    %s20 = scalar_lea.sflag [#allocation14], 1
    %21 = vsyncpa %s20, 0
    loop: start=0, step=1, limit=4
    $region2: #{tpu_custom_call.1} parent=1 // loop_pre_header
      _
    $region3: #{tpu_custom_call.1} parent=1 // loop_header
      %s23 = sphi 0, %s27
      %p24 = scmp.ge.s32.totalorder %s23, 4
      %s30 = sphi 0, %s42
      %s31 = sphi 0, %s38
      %s32 = sphi 0, %s30
      %s33 = sphi 0, %s31
      %s34 = sphi 0, %s32
      %s35 = sphi 0, %s33
      %s47 = sphi 0, %s49
      %s50 = sphi 0, %s47
      %s51 = sphi 0, %s50
      %s67 = sphi 0, %s51
      %s73 = sphi 0, %s75
      %s76 = sphi 0, %s73
      %s77 = sphi 0, %s76
      %s93 = sphi 0, %s77
      %s101 = sphi 0, %s103
      %s104 = sphi 0, %s101
      %s105 = sphi 0, %s104
      %s121 = sphi 0, %s105
      %s127 = sphi 0, %s129
      %s130 = sphi 0, %s127
      %s131 = sphi 0, %s130
      %s147 = sphi 0, %s131
      %s153 = sphi 0, %s155
      %s156 = sphi 0, %s153
      %s157 = sphi 0, %s156
      %s173 = sphi 0, %s157
    $region4: #{tpu_custom_call.1} parent=1 // loop_header_branch
      %26 = sbr.rel (%p24) target = $region8
    $region5: #{tpu_custom_call.1} parent=1 // loop_body
      %s28 = ssub.s32 %s23, 1
      %s29 = ssub.s32 %s23, 2
      %s36 = sadd.s32 1, %s31
      %p37 = scmp.ge.s32.totalorder %s36, 1
      %s38 = scalar_select %p37, 0, %s36
      %s39 = sadd.s32 1, %s30
      %s40 = scalar_select %p37, %s39, %s30
      %p41 = scmp.ge.s32.totalorder %s40, 2
      %s42 = scalar_select %p41, 0, %s40
      %s43 = ssub.s32 %s30, %s42
      %s44 = ssub.s32 %s31, %s38
      %s45 = sor.u32 %s43, %s44
      %p46 = scmp.eq.s32.totalorder %s45, 0
      %s48 = sadd.s32 %s47, 1
      %s49 = scalar_select %p46, %s47, %s48
      %p52 = pneg %p46
      %p53 = scmp.eq.s32.totalorder %s23, 1
      %p54 = por %p52, %p53
      %p55 = scmp.ne.s32.totalorder %s47, %s50
      %p56 = scmp.eq.s32.totalorder %s23, 0
      %p57 = por %p55, %p56
      %p58 = scmp.ne.s32.totalorder %s47, %s50
      %p59 = scmp.eq.s32.totalorder %s28, 1
      %p60 = por %p58, %p59
      %p61 = scmp.ne.s32.totalorder %s50, %s51
      %p62 = scmp.eq.s32.totalorder %s28, 0
      %p63 = por %p61, %p62
      %p64 = scmp.ne.s32.totalorder %s50, %s51
      %p65 = scmp.eq.s32.totalorder %s29, 1
      %p66 = por %p64, %p65
      %p68 = scmp.ne.s32.totalorder %s51, %s67
      %p69 = scmp.eq.s32.totalorder %s29, 0
      %p70 = por %p68, %p69
      %s71 = ssub.s32 %s30, %s42
      %p72 = scmp.eq.s32.totalorder %s71, 0
      %s74 = sadd.s32 %s73, 1
      %s75 = scalar_select %p72, %s73, %s74
      %p78 = pneg %p72
      %p79 = scmp.eq.s32.totalorder %s23, 1
      %p80 = por %p78, %p79
      %p81 = scmp.ne.s32.totalorder %s73, %s76
      %p82 = scmp.eq.s32.totalorder %s23, 0
      %p83 = por %p81, %p82
      %p84 = scmp.ne.s32.totalorder %s73, %s76
      %p85 = scmp.eq.s32.totalorder %s28, 1
      %p86 = por %p84, %p85
      %p87 = scmp.ne.s32.totalorder %s76, %s77
      %p88 = scmp.eq.s32.totalorder %s28, 0
      %p89 = por %p87, %p88
      %p90 = scmp.ne.s32.totalorder %s76, %s77
      %p91 = scmp.eq.s32.totalorder %s29, 1
      %p92 = por %p90, %p91
      %p94 = scmp.ne.s32.totalorder %s77, %s93
      %p95 = scmp.eq.s32.totalorder %s29, 0
      %p96 = por %p94, %p95
      %s97 = ssub.s32 %s30, %s42
      %s98 = ssub.s32 %s31, %s38
      %s99 = sor.u32 %s97, %s98
      %p100 = scmp.eq.s32.totalorder %s99, 0
      %s102 = sadd.s32 %s101, 1
      %s103 = scalar_select %p100, %s101, %s102
      %p106 = pneg %p100
      %p107 = scmp.eq.s32.totalorder %s23, 1
      %p108 = por %p106, %p107
      %p109 = scmp.ne.s32.totalorder %s101, %s104
      %p110 = scmp.eq.s32.totalorder %s23, 0
      %p111 = por %p109, %p110
      %p112 = scmp.ne.s32.totalorder %s101, %s104
      %p113 = scmp.eq.s32.totalorder %s28, 1
      %p114 = por %p112, %p113
      %p115 = scmp.ne.s32.totalorder %s104, %s105
      %p116 = scmp.eq.s32.totalorder %s28, 0
      %p117 = por %p115, %p116
      %p118 = scmp.ne.s32.totalorder %s104, %s105
      %p119 = scmp.eq.s32.totalorder %s29, 1
      %p120 = por %p118, %p119
      %p122 = scmp.ne.s32.totalorder %s105, %s121
      %p123 = scmp.eq.s32.totalorder %s29, 0
      %p124 = por %p122, %p123
      %s125 = ssub.s32 %s30, %s42
      %p126 = scmp.eq.s32.totalorder %s125, 0
      %s128 = sadd.s32 %s127, 1
      %s129 = scalar_select %p126, %s127, %s128
      %p132 = pneg %p126
      %p133 = scmp.eq.s32.totalorder %s23, 1
      %p134 = por %p132, %p133
      %p135 = scmp.ne.s32.totalorder %s127, %s130
      %p136 = scmp.eq.s32.totalorder %s23, 0
      %p137 = por %p135, %p136
      %p138 = scmp.ne.s32.totalorder %s127, %s130
      %p139 = scmp.eq.s32.totalorder %s28, 1
      %p140 = por %p138, %p139
      %p141 = scmp.ne.s32.totalorder %s130, %s131
      %p142 = scmp.eq.s32.totalorder %s28, 0
      %p143 = por %p141, %p142
      %p144 = scmp.ne.s32.totalorder %s130, %s131
      %p145 = scmp.eq.s32.totalorder %s29, 1
      %p146 = por %p144, %p145
      %p148 = scmp.ne.s32.totalorder %s131, %s147
      %p149 = scmp.eq.s32.totalorder %s29, 0
      %p150 = por %p148, %p149
      %s151 = ssub.s32 %s30, %s42
      %p152 = scmp.eq.s32.totalorder %s151, 0
      %s154 = sadd.s32 %s153, 1
      %s155 = scalar_select %p152, %s153, %s154
      %p158 = pneg %p152
      %p159 = scmp.eq.s32.totalorder %s23, 1
      %p160 = por %p158, %p159
      %p161 = scmp.ne.s32.totalorder %s153, %s156
      %p162 = scmp.eq.s32.totalorder %s23, 0
      %p163 = por %p161, %p162
      %p164 = scmp.ne.s32.totalorder %s153, %s156
      %p165 = scmp.eq.s32.totalorder %s28, 1
      %p166 = por %p164, %p165
      %p167 = scmp.ne.s32.totalorder %s156, %s157
      %p168 = scmp.eq.s32.totalorder %s28, 0
      %p169 = por %p167, %p168
      %p170 = scmp.ne.s32.totalorder %s156, %s157
      %p171 = scmp.eq.s32.totalorder %s29, 1
      %p172 = por %p170, %p171
      %p174 = scmp.ne.s32.totalorder %s157, %s173
      %p175 = scmp.eq.s32.totalorder %s29, 0
      %p176 = por %p174, %p175
      %p177 = scmp.le.s32.totalorder 1, %s23
      %p178 = scmp.lt.s32.totalorder %s23, 3
      %p179 = pnand %p177, %p178
      %p180 = pneg %p179
      // Predicated region
      $region9: #{tpu_custom_call.1} parent=5 // pred_check
        _
      $region10: #{tpu_custom_call.1} parent=5 // pred_check_branch
        %182 = sbr.rel (%p179) target = $region12
      $region11: #{tpu_custom_call.1} parent=5 // pred_region
        %s183 = ssub.s32 %s23, 1
      $region12: #{tpu_custom_call.1} parent=5 // pred_fallthru
        _
      %p184 = scmp.lt.s32.totalorder %s23, 2
      // Predicated region
      $region13: #{tpu_custom_call.1} parent=5 // pred_check
        %p185 = pneg %p184
      $region14: #{tpu_custom_call.1} parent=5 // pred_check_branch
        %187 = sbr.rel (%p185) target = $region16
      $region15: #{tpu_custom_call.1} parent=5 // pred_region
        // Predicated region
        $region17: #{tpu_custom_call.1} parent=15 // pred_check
          %p188 = pneg %p57
        $region18: #{tpu_custom_call.1} parent=15 // pred_check_branch
          %190 = sbr.rel (%p188) target = $region20
        $region19: #{tpu_custom_call.1} parent=15 // pred_region
          %s191 = sand.u32 %s47, 1
          %s192 = scalar_lea.sflag [#allocation7], %s191
          %s193 = sand.u32 %s47, 1
          %s194 = smul.addr %s193, 8
          %s195 = scalar_lea.vmem [#allocation6], %s194
          %197 = vsyncadd %s192, 0
          %s198 = sadd.s32 %s31, %s30
          %s199 = smul.addr %s198, 8
          %s200 = scalar_lea.hbm %s0, %s199
          %s202 = sshll.u32 %s200, 4
          %s203 = int_to_ptr.hbm [resolvable:$true] %s202
          %s204 = sshll.u32 %s195, 4
          %s205 = int_to_ptr.vmem [resolvable:$true] %s204
          %207 = dma.hbm_to_vmem [thread:$0]  %s203, 128, %s205, %s192
        $region20: #{tpu_custom_call.1} parent=15 // pred_fallthru
          _
        // Predicated region
        $region21: #{tpu_custom_call.1} parent=15 // pred_check
          %p208 = pneg %p83
        $region22: #{tpu_custom_call.1} parent=15 // pred_check_branch
          %210 = sbr.rel (%p208) target = $region24
        $region23: #{tpu_custom_call.1} parent=15 // pred_region
          %s211 = sand.u32 %s23, 1
          %s212 = scalar_lea.sflag [#allocation10], %s211
          %s213 = sand.u32 %s73, 1
          %s214 = scalar_lea.vmem [#allocation9], %s213
          %216 = vsyncadd %s212, 0
          %s217 = scalar_lea.hbm %s1, %s30
          %s219 = sshll.u32 %s217, 4
          %s220 = int_to_ptr.hbm [resolvable:$true] %s219
          %s221 = sshll.u32 %s214, 4
          %s222 = int_to_ptr.vmem [resolvable:$true] %s221
          %224 = dma.hbm_to_vmem [thread:$0]  %s220, 16, %s222, %s212
        $region24: #{tpu_custom_call.1} parent=15 // pred_fallthru
          _
        // Predicated region
        $region25: #{tpu_custom_call.1} parent=15 // pred_check
          %p225 = pneg %p111
        $region26: #{tpu_custom_call.1} parent=15 // pred_check_branch
          %227 = sbr.rel (%p225) target = $region28
        $region27: #{tpu_custom_call.1} parent=15 // pred_region
          %s228 = sand.u32 %s23, 1
          %s229 = scalar_lea.sflag [#allocation10], %s228
          %s230 = sand.u32 %s101, 1
          %s231 = scalar_lea.vmem [#allocation11], %s230
          %233 = vsyncadd %s229, 0
          %s234 = sadd.s32 %s31, %s30
          %s235 = scalar_lea.hbm %s2, %s234
          %s237 = sshll.u32 %s235, 4
          %s238 = int_to_ptr.hbm [resolvable:$true] %s237
          %s239 = sshll.u32 %s231, 4
          %s240 = int_to_ptr.vmem [resolvable:$true] %s239
          %242 = dma.hbm_to_vmem [thread:$0]  %s238, 16, %s240, %s229
        $region28: #{tpu_custom_call.1} parent=15 // pred_fallthru
          _
      $region16: #{tpu_custom_call.1} parent=5 // pred_fallthru
        _
      %p243 = scmp.le.s32.totalorder 1, %s23
      %p244 = scmp.lt.s32.totalorder %s23, 3
      %p245 = pnand %p243, %p244
      %p246 = pneg %p245
      // Predicated region
      $region29: #{tpu_custom_call.1} parent=5 // pred_check
        _
      $region30: #{tpu_custom_call.1} parent=5 // pred_check_branch
        %248 = sbr.rel (%p245) target = $region32
      $region31: #{tpu_custom_call.1} parent=5 // pred_region
        %s249 = ssub.s32 %s23, 1
        %s250 = sand.u32 %s50, 1
        %s251 = scalar_lea.sflag [#allocation7], %s250
        %s252 = sand.u32 %s50, 1
        %s253 = smul.addr %s252, 8
        %s254 = scalar_lea.vmem [#allocation6], %s253
        // Predicated region
        $region33: #{tpu_custom_call.1} parent=31 // pred_check
          %p255 = pneg %p63
        $region34: #{tpu_custom_call.1} parent=31 // pred_check_branch
          %257 = sbr.rel (%p255) target = $region36
        $region35: #{tpu_custom_call.1} parent=31 // pred_region
          %259 = dma.done %s251, 128
        $region36: #{tpu_custom_call.1} parent=31 // pred_fallthru
          _
        %s260 = sand.u32 %s28, 1
        %s261 = scalar_lea.sflag [#allocation10], %s260
        %s262 = sand.u32 %s76, 1
        %s263 = scalar_lea.vmem [#allocation9], %s262
        // Predicated region
        $region37: #{tpu_custom_call.1} parent=31 // pred_check
          %p264 = pneg %p89
        $region38: #{tpu_custom_call.1} parent=31 // pred_check_branch
          %266 = sbr.rel (%p264) target = $region40
        $region39: #{tpu_custom_call.1} parent=31 // pred_region
          %268 = dma.done %s261, 16
        $region40: #{tpu_custom_call.1} parent=31 // pred_fallthru
          _
        %s269 = sand.u32 %s28, 1
        %s270 = scalar_lea.sflag [#allocation10], %s269
        %s271 = sand.u32 %s104, 1
        %s272 = scalar_lea.vmem [#allocation11], %s271
        // Predicated region
        $region41: #{tpu_custom_call.1} parent=31 // pred_check
          %p273 = pneg %p117
        $region42: #{tpu_custom_call.1} parent=31 // pred_check_branch
          %275 = sbr.rel (%p273) target = $region44
        $region43: #{tpu_custom_call.1} parent=31 // pred_region
          %277 = dma.done %s270, 16
        $region44: #{tpu_custom_call.1} parent=31 // pred_fallthru
          _
        %s278 = sand.u32 %s50, 1
        %s279 = scalar_lea.sflag [#allocation7], %s278
        %s280 = sand.u32 %s50, 1
        %s281 = smul.addr %s280, 8
        %s282 = scalar_lea.vmem [#allocation6], %s281
        %p283 = pneg %p63
        %p284 = pneg %p60
        %s285 = sand.u32 %s28, 1
        %s286 = scalar_lea.sflag [#allocation10], %s285
        %s287 = sand.u32 %s76, 1
        %s288 = scalar_lea.vmem [#allocation9], %s287
        %p289 = pneg %p89
        %p290 = pneg %p86
        %s291 = sand.u32 %s28, 1
        %s292 = scalar_lea.sflag [#allocation10], %s291
        %s293 = sand.u32 %s104, 1
        %s294 = scalar_lea.vmem [#allocation11], %s293
        %p295 = pneg %p117
        %p296 = pneg %p114
        %p297 = pneg %p143
        %p298 = pneg %p140
        %s299 = sand.u32 %s130, 1
        %s300 = scalar_lea.sflag [#allocation8], %s299
        %s301 = sand.u32 %s130, 1
        %s302 = scalar_lea.vmem [#allocation12], %s301
        %p303 = pneg %p169
        %p304 = pneg %p166
        %s305 = sand.u32 %s156, 1
        %s306 = scalar_lea.sflag [#allocation14], %s305
        %s307 = sand.u32 %s156, 1
        %s308 = scalar_lea.vmem [#allocation13], %s307
        %v309 = vld [vmem:[%s254] sm:$0xff]
        %v310 = vld [vmem:[%s263] sm:$0x1]
        %v312 = vperm.slane %v310, 0
        %v314 = vmul.f32 %v309, %v312
        %vm315 = vcmask 261120
        %v316 = vsel %vm315, %v314, 0.0
        %317 = vadd.xlane.f32.xlu0 %v316
        %v318 = vpop.xlane.xlu0 %317
        %v319 = vld [vmem:[%s272] sm:$0x1]
        %vm320 = vcmp.gt.f32.partialorder %v319, 0.5
        %v322 = vperm.slane %v318, 0
        %v323 = vperm.slane %v318, 1
        %v324 = vperm.slane %v318, 2
        %v325 = vperm.slane %v318, 3
        %v326 = vperm.slane %v318, 4
        %v327 = vperm.slane %v318, 5
        %v328 = vperm.slane %v318, 6
        %v329 = vperm.slane %v318, 7
        %330 = vst [vmem:[#allocation1] ss:$9 sm:$0xff] %v322
        %s331 = scalar_lea.vmem [#allocation1], 1
        %332 = vst [vmem:[%s331] ss:$9 sm:$0xff] %v323
        %s333 = scalar_lea.vmem [#allocation1], 2
        %334 = vst [vmem:[%s333] ss:$9 sm:$0xff] %v324
        %s335 = scalar_lea.vmem [#allocation1], 3
        %336 = vst [vmem:[%s335] ss:$9 sm:$0xff] %v325
        %s337 = scalar_lea.vmem [#allocation1], 4
        %338 = vst [vmem:[%s337] ss:$9 sm:$0xff] %v326
        %s339 = scalar_lea.vmem [#allocation1], 5
        %340 = vst [vmem:[%s339] ss:$9 sm:$0xff] %v327
        %s341 = scalar_lea.vmem [#allocation1], 6
        %342 = vst [vmem:[%s341] ss:$9 sm:$0xff] %v328
        %s343 = scalar_lea.vmem [#allocation1], 7
        %344 = vst [vmem:[%s343] ss:$9 sm:$0xff] %v329
        %v345 = vld [vmem:[#allocation1] sm:$0xff]
        %346 = vset.pattern.permute.xlu0 0
        %347 = vperm.xlu0 %346, %v345
        %v348 = vpop.permute.xlu0 %347
        %v349 = vlaneseq
        %v350 = vand.u32 %v349, 127
        %v351 = vperm.slane %v348, %v350
        %v353 = vsel %vm320, %v351, -inf
        %p354 = scmp.eq.s32.totalorder %s33, 0
        // Predicated region
        $region45: #{tpu_custom_call.1} parent=31 // pred_check
          %p355 = pneg %p354
        $region46: #{tpu_custom_call.1} parent=31 // pred_check_branch
          %357 = sbr.rel (%p355) target = $region48
        $region47: #{tpu_custom_call.1} parent=31 // pred_region
          %vm358 = vcmask 0
          %359 = vst.msk [vmem:[#allocation3] sm:$0x1] %vm358, -inf
          %360 = vst.msk [vmem:[#allocation4] sm:$0x1] %vm358, 0.0
          %vm361 = vcmask 253952
          %362 = vst.msk [vmem:[#allocation5] sm:$0x1] %vm361, 0.0
        $region48: #{tpu_custom_call.1} parent=31 // pred_fallthru
          _
        %vm363 = vcmask 57344
        %364 = vst.msk [vmem:[#allocation2] sm:$0x1] %vm363, %v353
        %v365 = vld [vmem:[#allocation3] sm:$0x1]
        %v366 = vsel %vm363, %v353, -inf
        %367 = vmax.xlane.f32.xlu0 %v366
        %v368 = vpop.xlane.xlu0 %367
        %v369 = vmax.f32 %v365, %v368
        %v370 = vmax.f32 %v369, -3.4028235e+38
        %v371 = vsub.f32 %v365, %v370
        %v372 = vmul.f32 %v371, 1.442695
        %v373 = vpow.pop %v372
        %375 = vset.pattern.permute.xlu0 0
        %376 = vperm.xlu0 %375, %v370
        %v377 = vpop.permute.xlu0 %376
        %v379 = vperm.slane %v377, 0
        %v380 = vsub.f32 %v353, %v379
        %v381 = vmul.f32 %v380, 1.442695
        %v382 = vpow.pop %v381
        %v383 = vld [vmem:[#allocation4] sm:$0x1]
        %v384 = vmul.f32 %v373, %v383
        %v385 = vsel %vm363, %v382, 0.0
        %386 = vadd.xlane.f32.xlu0 %v385
        %v387 = vpop.xlane.xlu0 %386
        %v388 = vadd.f32 %v384, %v387
        %vm389 = vcmask 0
        %390 = vst.msk [vmem:[#allocation4] sm:$0x1] %vm389, %v388
        %v391 = vld [vmem:[#allocation5] sm:$0x1]
        %393 = vset.pattern.permute.xlu0 0
        %394 = vperm.xlu0 %393, %v373
        %v395 = vpop.permute.xlu0 %394
        %v397 = vperm.slane %v395, 0
        %v398 = vmul.f32 %v397, %v391
        %vm399 = vcmask 64512
        %v401 = vsel %vm399, %v382, 0
        %403 = vmatpush.msra.mxu0 0.0
        %404 = vmatpush.msra.mxu0 0.0
        %405 = vmatpush.msra.mxu0 0.0
        %406 = vmatpush.msra.mxu0 0.0
        %407 = vmatpush.msra.mxu0 0.0
        %408 = vmatpush.msra.mxu0 0.0
        %409 = vmatpush.msra.mxu0 0.0
        %410 = vmatpush.msra.mxu0 0.0
        %411 = vmatpush.msra.mxu0 0.0
        %412 = vmatpush.msra.mxu0 0.0
        %413 = vmatpush.msra.mxu0 0.0
        %414 = vmatpush.msra.mxu0 0.0
        %415 = vmatpush.msra.mxu0 0.0
        %416 = vmatpush.msra.mxu0 0.0
        %417 = vmatpush.msra.mxu0 0.0
        %418 = vmatpush.msra.mxu0 %v309
        %419 = vmatmul.f32.gmra.mxu0 %v401
        %v420 = vpop.f32.mrf.mxu0
        %v421 = vadd.f32 0.0, %v420
        %422 = vdwg.mxu0
        %v423 = vadd.f32 %v398, %v421
        %vm424 = vcmask 253952
        %425 = vst.msk [vmem:[#allocation5] sm:$0x1] %vm424, %v423
        %426 = vst.msk [vmem:[#allocation3] sm:$0x1] %vm389, %v369
        // Predicated region
        $region49: #{tpu_custom_call.1} parent=31 // pred_check
          %p427 = pneg %p354
        $region50: #{tpu_custom_call.1} parent=31 // pred_check_branch
          %429 = sbr.rel (%p427) target = $region52
        $region51: #{tpu_custom_call.1} parent=31 // pred_region
          %v430 = vld [vmem:[#allocation4] sm:$0x1]
          %v431 = vrcp.pop %v430
          %v432 = vmul.f32 %v430, %v431
          %v433 = vsub.f32 1.0, %v432
          %v434 = vmul.f32 %v431, %v433
          %v435 = vadd.f32 %v431, %v434
          %vm436 = vweird.f32 %v430
          %vm437 = vweird.f32 %v431
          %vm438 = vmor %vm436, %vm437
          %v439 = vsel %vm438, %v431, %v435
          %v440 = vand.u32 2147483647, %v430
          %vm441 = vcmp.eq.f32.partialorder %v440, 8.507059e+37
          %v442 = vand.u32 %v430, 2147483648
          %v443 = vor.u32 1.1754944e-38, %v442
          %v444 = vsel %vm441, %v443, %v439
          %v445 = vmul.f32 1.0, %v444
          %v446 = vld [vmem:[#allocation2] sm:$0x1]
          %v447 = vld [vmem:[#allocation3] sm:$0x1]
          %449 = vset.pattern.permute.xlu0 0
          %450 = vperm.xlu0 %449, %v447
          %v451 = vpop.permute.xlu0 %450
          %v453 = vperm.slane %v451, 0
          %v454 = vsub.f32 %v446, %v453
          %v455 = vmul.f32 %v454, 1.442695
          %v456 = vpow.pop %v455
          %458 = vset.pattern.permute.xlu0 0
          %459 = vperm.xlu0 %458, %v445
          %v460 = vpop.permute.xlu0 %459
          %v462 = vperm.slane %v460, 0
          %v463 = vmul.f32 %v456, %v462
          %464 = vst.msk [vmem:[%s308] sm:$0x1] %vm363, %v463
          %v465 = vld [vmem:[#allocation5] sm:$0x1]
          %v466 = vmul.f32 %v465, %v462
          %467 = vst.msk [vmem:[%s302] sm:$0x1] %vm424, %v466
        $region52: #{tpu_custom_call.1} parent=31 // pred_fallthru
          _
        %s468 = sand.u32 %s130, 1
        %s469 = scalar_lea.sflag [#allocation8], %s468
        %s470 = sand.u32 %s130, 1
        %s471 = scalar_lea.vmem [#allocation12], %s470
        %s472 = sand.u32 %s156, 1
        %s473 = scalar_lea.sflag [#allocation14], %s472
        %s474 = sand.u32 %s156, 1
        %s475 = scalar_lea.vmem [#allocation13], %s474
        // Predicated region
        $region53: #{tpu_custom_call.1} parent=31 // pred_check
          %p476 = pneg %p140
        $region54: #{tpu_custom_call.1} parent=31 // pred_check_branch
          %478 = sbr.rel (%p476) target = $region56
        $region55: #{tpu_custom_call.1} parent=31 // pred_region
          %480 = vsyncadd %s469, 0
          %s481 = scalar_lea.hbm %s3, %s32
          %s483 = sshll.u32 %s471, 4
          %s484 = int_to_ptr.vmem [resolvable:$true] %s483
          %s485 = sshll.u32 %s481, 4
          %s486 = int_to_ptr.hbm [resolvable:$true] %s485
          %488 = dma.vmem_to_hbm [thread:$0]  %s484, 16, %s486, %s469
        $region56: #{tpu_custom_call.1} parent=31 // pred_fallthru
          _
        // Predicated region
        $region57: #{tpu_custom_call.1} parent=31 // pred_check
          %p489 = pneg %p166
        $region58: #{tpu_custom_call.1} parent=31 // pred_check_branch
          %491 = sbr.rel (%p489) target = $region60
        $region59: #{tpu_custom_call.1} parent=31 // pred_region
          %493 = vsyncadd %s473, 0
          %s494 = scalar_lea.hbm %s4, %s32
          %s496 = sshll.u32 %s475, 4
          %s497 = int_to_ptr.vmem [resolvable:$true] %s496
          %s498 = sshll.u32 %s494, 4
          %s499 = int_to_ptr.hbm [resolvable:$true] %s498
          %501 = dma.vmem_to_hbm [thread:$0]  %s497, 16, %s499, %s473
        $region60: #{tpu_custom_call.1} parent=31 // pred_fallthru
          _
      $region32: #{tpu_custom_call.1} parent=5 // pred_fallthru
        _
      %p502 = scmp.le.s32.totalorder 2, %s23
      // Predicated region
      $region61: #{tpu_custom_call.1} parent=5 // pred_check
        %p503 = pneg %p502
      $region62: #{tpu_custom_call.1} parent=5 // pred_check_branch
        %505 = sbr.rel (%p503) target = $region64
      $region63: #{tpu_custom_call.1} parent=5 // pred_region
        %s506 = ssub.s32 %s23, 2
        // Predicated region
        $region65: #{tpu_custom_call.1} parent=63 // pred_check
          %p507 = pneg %p146
        $region66: #{tpu_custom_call.1} parent=63 // pred_check_branch
          %509 = sbr.rel (%p507) target = $region68
        $region67: #{tpu_custom_call.1} parent=63 // pred_region
          %s510 = sand.u32 %s131, 1
          %s511 = scalar_lea.sflag [#allocation8], %s510
          %s512 = sand.u32 %s131, 1
          %s513 = scalar_lea.vmem [#allocation12], %s512
          %515 = dma.done %s511, 16
        $region68: #{tpu_custom_call.1} parent=63 // pred_fallthru
          _
        // Predicated region
        $region69: #{tpu_custom_call.1} parent=63 // pred_check
          %p516 = pneg %p172
        $region70: #{tpu_custom_call.1} parent=63 // pred_check_branch
          %518 = sbr.rel (%p516) target = $region72
        $region71: #{tpu_custom_call.1} parent=63 // pred_region
          %s519 = sand.u32 %s157, 1
          %s520 = scalar_lea.sflag [#allocation14], %s519
          %s521 = sand.u32 %s157, 1
          %s522 = scalar_lea.vmem [#allocation13], %s521
          %524 = dma.done %s520, 16
        $region72: #{tpu_custom_call.1} parent=63 // pred_fallthru
          _
      $region64: #{tpu_custom_call.1} parent=5 // pred_fallthru
        _
    $region6: #{tpu_custom_call.1} parent=1 // loop_footer
      %s27 = sadd.s32 1, %s23
    $region7: #{tpu_custom_call.1} parent=1 // loop_footer_branch
      %22 = sbr.rel target = $region3
    $region8: #{tpu_custom_call.1} parent=1 // loop_exit
      _
    %525 = vsyncpa [#allocation7], 1
    %s526 = scalar_lea.sflag [#allocation7], 1
    %527 = vsyncpa %s526, 1
    %528 = vsyncpa [#allocation10], 1
    %s529 = scalar_lea.sflag [#allocation10], 1
    %530 = vsyncpa %s529, 1
    %531 = vsyncpa [#allocation8], 1
    %s532 = scalar_lea.sflag [#allocation8], 1
    %533 = vsyncpa %s532, 1
    %534 = vsyncpa [#allocation14], 1
    %s535 = scalar_lea.sflag [#allocation14], 1
    %536 = vsyncpa %s535, 1

</llo_original>
